<compile_context>
chip_gen: v7x
topology: tpu7x:2x2x1
jax: 0.10.0
libtpu: 0.0.40
codegen_flags: <defaults>
</compile_context>

<pallas_src>
import jax
import jax.numpy as jnp
from jax.experimental import pallas as pl
from jax.experimental.pallas import tpu as pltpu


def _round_up(x, m):
    return ((x + m - 1) // m) * m


def _head_kernel(x_ref, wd_ref, bd_ref, wo_ref, bo_ref, out_ref):
    """Fused dense -> tanh -> out_proj on one batch tile.

    x_ref  : [tB, H]   CLS-token features (f32 or bf16)
    wd_ref : [H, H]    dense weight, pre-transposed, bf16 (resident)
    bd_ref : [1, H]    dense bias, f32
    wo_ref : [H, Lp]   out_proj weight, pre-transposed + lane-padded, bf16
    bo_ref : [1, Lp]   out_proj bias, lane-padded, f32
    out_ref: [tB, Lp]  logits, f32
    """
    x = x_ref[...].astype(jnp.bfloat16)
    # dense + tanh (dropout is identity in eval mode); f32 MXU accumulation.
    h = jnp.dot(x, wd_ref[...], preferred_element_type=jnp.float32) + bd_ref[...]
    h = jnp.tanh(h)
    # out_proj (lane-padded to 128 for a dense, unmasked store).
    logits = (jnp.dot(h.astype(jnp.bfloat16), wo_ref[...],
                      preferred_element_type=jnp.float32) + bo_ref[...])
    out_ref[...] = logits.astype(out_ref.dtype)


def roberta_classification_head(features, w_dense, b_dense, w_out, b_out):
    """features: [B, S, H] (f32 or bf16); weights stored [in, out] (PyTorch weight.T).

    Returns logits [B, num_labels] f32.
    """
    B, S, H = features.shape
    L = w_out.shape[-1]
    Lp = _round_up(L, 128)                     # lane-dense out_proj width

    # bf16 weights (native MXU dtype); zero-pad out_proj to 128 lanes.
    wd = w_dense.astype(jnp.bfloat16)
    wo = jnp.pad(w_out, ((0, 0), (0, Lp - L))).astype(jnp.bfloat16)
    bd = b_dense.reshape(1, H).astype(jnp.float32)
    bo = jnp.pad(b_out, (0, Lp - L)).reshape(1, Lp).astype(jnp.float32)

    # ---- batch tiling: aim for >= 2 grid steps (megacore + DMA overlap) ----
    if B < 8:
        tB = 8                                  # pad tiny batches to one 8-row tile
    else:
        tB = min(512, max(8, _round_up(-(-B // 2), 8)))
        if B % tB != 0:
            # Prefer an exact multiple-of-8 divisor of B so the fused CLS
            # gather needs no ragged tile; otherwise keep tB and handle the
            # ragged last block via the padded output below.
            for d in range(tB, max(8, tB // 2) - 1, -8):
                if B % d == 0:
                    tB = d
                    break
    grid_b = -(-B // tB)                        # number of batch tiles
    B_pad = grid_b * tB

    # Fuse the CLS gather into the BlockSpec when it is layout-legal.
    # NOTE: `features` must be the contiguous row-major encoder output so the
    # reshape below stays a view (no HBM copy); this is true for any freshly
    # produced [B, S, H] activation.
    fuse_cls = (H % 128 == 0) and (B >= 8)
    if fuse_cls:
        x_in = features.reshape(B, S * H)       # view; kernel DMAs only CLS rows
    else:
        # Tiny-B / odd-H fallback: materialize the (cheap) [B, H] gather in
        # bf16 and pad the sublane dim to a multiple of 8.
        x_in = features[:, 0, :].astype(jnp.bfloat16)
        if B_pad != B:
            x_in = jnp.pad(x_in, ((0, B_pad - B), (0, 0)))

    x_itemsize = jnp.dtype(x_in.dtype).itemsize
    n_x_buf = 2 if grid_b <= 2 else 3           # deeper x pipeline on longer grids

    # VMEM budget: single-buffered resident weights/biases + n_x_buf x tiles
    # + double-buffered output tiles (+ headroom).  Stays well under the
    # 32 MiB scoped / 64 MiB-per-TC (v7x) envelope for H <= 1024, tB <= 512.
    vmem_bytes = (wd.size * 2 + wo.size * 2 + bd.size * 4 + bo.size * 4
                  + n_x_buf * tB * H * x_itemsize
                  + 2 * tB * Lp * 4)
    vmem_limit = int(min(32 * 1024 * 1024,
                         max(4 * 1024 * 1024, 2 * vmem_bytes + (1 << 20))))

    # Advisory cost so XLA can overlap this small head with neighboring ops.
    cost = pl.CostEstimate(
        flops=2 * B_pad * H * H + 2 * B_pad * H * Lp,
        transcendentals=B_pad * H,
        bytes_accessed=(B_pad * H * x_itemsize
                        + (H * H + H * Lp) * 2
                        + (H + Lp) * 4
                        + B_pad * Lp * 4),
    )

    out = pl.pallas_call(
        _head_kernel,
        out_shape=jax.ShapeDtypeStruct((B_pad, Lp), jnp.float32),
        grid=(grid_b,),
        in_specs=[
            # x (CLS) tile: pipelined (2-3 deep) against compute.
            pl.BlockSpec((tB, H), lambda i: (i, 0),
                         pipeline_mode=pl.Buffered(n_x_buf)),
            # Resident operands: constant index_map -> single buffer.
            pl.BlockSpec((H, H), lambda i: (0, 0),
                         pipeline_mode=pl.Buffered(1)),
            pl.BlockSpec((1, H), lambda i: (0, 0),
                         pipeline_mode=pl.Buffered(1)),
            pl.BlockSpec((H, Lp), lambda i: (0, 0),
                         pipeline_mode=pl.Buffered(1)),
            pl.BlockSpec((1, Lp), lambda i: (0, 0),
                         pipeline_mode=pl.Buffered(1)),
        ],
        out_specs=pl.BlockSpec((tB, Lp), lambda i: (i, 0)),
        compiler_params=pltpu.CompilerParams(
            dimension_semantics=("parallel",),
            vmem_limit_bytes=vmem_limit,
        ),
        cost_estimate=cost,
    )(x_in, wd, bd, wo, bo)

    # Rows >= B (ragged last tile) hold tanh(b_dense)-derived garbage and are
    # intentionally discarded here; never read out[B:].
    return out[:B, :L]


if __name__ == "__main__":
    # Small config: hidden=128 (one lane width, exercises the fused CLS gather
    # path), num_labels=4, batch=16 (-> tB=8, a 2-step "parallel" grid), seq=8.
    B, S, H, L = 16, 8, 128, 4

    key = jax.random.PRNGKey(0)
    k_feat, k_wd, k_bd, k_wo, k_bo = jax.random.split(key, 5)

    features = jax.random.normal(k_feat, (B, S, H), dtype=jnp.float32)
    # Parameters stored as [in, out] (i.e. PyTorch weight.T), deterministic init.
    w_dense = jax.random.normal(k_wd, (H, H), dtype=jnp.float32) * 0.02
    b_dense = jax.random.normal(k_bd, (H,), dtype=jnp.float32) * 0.02
    w_out = jax.random.normal(k_wo, (H, L), dtype=jnp.float32) * 0.02
    b_out = jax.random.normal(k_bo, (L,), dtype=jnp.float32) * 0.02

    logits = roberta_classification_head(features, w_dense, b_dense, w_out, b_out)
    logits = jax.block_until_ready(logits)

    # Pure-JAX f32 reference; kernel matmuls run in bf16 (f32 accumulation), so
    # use a relaxed tolerance.  (Re-verify tolerance at H=768/1024 if deployed.)
    x = features[:, 0, :]
    ref = jnp.tanh(x @ w_dense + b_dense) @ w_out + b_out
    assert logits.shape == (B, L)
    assert jnp.allclose(logits, ref, atol=1e-2, rtol=1e-2), "mismatch vs reference"

    print("KERNEL_OK")
</pallas_src>

<mosaic_0001>
module attributes {stable_mosaic.version = 11 : i64} {
  func.func @_head_kernel(%arg0: i32, %arg1: memref<8x128xf32, #tpu.memory_space<vmem>>, %arg2: memref<128x128xbf16, #tpu.memory_space<vmem>>, %arg3: memref<1x128xf32, #tpu.memory_space<vmem>>, %arg4: memref<128x128xbf16, #tpu.memory_space<vmem>>, %arg5: memref<1x128xf32, #tpu.memory_space<vmem>>, %arg6: memref<8x128xf32, #tpu.memory_space<vmem>>) attributes {dimension_semantics = [#tpu.dimension_semantics<parallel>], iteration_bounds = array<i64: 2>, scalar_prefetch = 0 : i64, scratch_operands = 0 : i64, tpu.core_type = #tpu.core_type<tc>, window_params = [{pipeline_mode = #tpu.pipeline_mode<double_buffered>, transform_indices = @transform_0, window_bounds = array<i64: 8, 128>}, {pipeline_mode = #tpu.pipeline_mode<synchronous>, transform_indices = @transform_1, window_bounds = array<i64: 128, 128>}, {pipeline_mode = #tpu.pipeline_mode<synchronous>, transform_indices = @transform_2, window_bounds = array<i64: 1, 128>}, {pipeline_mode = #tpu.pipeline_mode<synchronous>, transform_indices = @transform_3, window_bounds = array<i64: 128, 128>}, {pipeline_mode = #tpu.pipeline_mode<synchronous>, transform_indices = @transform_4, window_bounds = array<i64: 1, 128>}, {transform_indices = @transform_5, window_bounds = array<i64: 8, 128>}]} {
    %c0 = arith.constant 0 : index
    %c0_0 = arith.constant 0 : index
    %0 = vector.load %arg1[%c0, %c0_0] : memref<8x128xf32, #tpu.memory_space<vmem>>, vector<8x128xf32>
    %1 = arith.truncf %0 : vector<8x128xf32> to vector<8x128xbf16>
    %c0_1 = arith.constant 0 : index
    %c0_2 = arith.constant 0 : index
    %2 = vector.load %arg2[%c0_1, %c0_2] : memref<128x128xbf16, #tpu.memory_space<vmem>>, vector<128x128xbf16>
    %cst = arith.constant dense<0.000000e+00> : vector<8x128xf32>
    %3 = tpu.matmul %1, %2, %cst {dimension_numbers = #tpu.dot_dimension_numbers<[1], [0], [0], [1], [0, 0, 1, 1], [], []>} : vector<8x128xbf16>, vector<128x128xbf16>, vector<8x128xf32> -> vector<8x128xf32>
    %c0_3 = arith.constant 0 : index
    %c0_4 = arith.constant 0 : index
    %4 = vector.load %arg3[%c0_3, %c0_4] : memref<1x128xf32, #tpu.memory_space<vmem>>, vector<1x128xf32>
    %5 = vector.broadcast %4 : vector<1x128xf32> to vector<8x128xf32>
    %6 = arith.addf %3, %5 : vector<8x128xf32>
    %7 = math.tanh %6 : vector<8x128xf32>
    %8 = arith.truncf %7 : vector<8x128xf32> to vector<8x128xbf16>
    %c0_5 = arith.constant 0 : index
    %c0_6 = arith.constant 0 : index
    %9 = vector.load %arg4[%c0_5, %c0_6] : memref<128x128xbf16, #tpu.memory_space<vmem>>, vector<128x128xbf16>
    %cst_7 = arith.constant dense<0.000000e+00> : vector<8x128xf32>
    %10 = tpu.matmul %8, %9, %cst_7 {dimension_numbers = #tpu.dot_dimension_numbers<[1], [0], [0], [1], [0, 0, 1, 1], [], []>} : vector<8x128xbf16>, vector<128x128xbf16>, vector<8x128xf32> -> vector<8x128xf32>
    %c0_8 = arith.constant 0 : index
    %c0_9 = arith.constant 0 : index
    %11 = vector.load %arg5[%c0_8, %c0_9] : memref<1x128xf32, #tpu.memory_space<vmem>>, vector<1x128xf32>
    %12 = vector.broadcast %11 : vector<1x128xf32> to vector<8x128xf32>
    %13 = arith.addf %10, %12 : vector<8x128xf32>
    %c0_10 = arith.constant 0 : index
    %c0_11 = arith.constant 0 : index
    %14 = vector.load %arg6[%c0_10, %c0_11] : memref<8x128xf32, #tpu.memory_space<vmem>>, vector<8x128xf32>
    tpu.vector_store %arg6[%c0_10, %c0_11], %13 {strides = array<i32>} : memref<8x128xf32, #tpu.memory_space<vmem>>, vector<8x128xf32>,
    return
  }
  func.func @transform_0(%arg0: i32) -> (i32, i32) {
    %c0_i32 = arith.constant 0 : i32
    %c0_i32_0 = arith.constant 0 : i32
    return %arg0, %c0_i32 : i32, i32
  }
  func.func @transform_1(%arg0: i32) -> (i32, i32) {
    %c0_i32 = arith.constant 0 : i32
    %c0_i32_0 = arith.constant 0 : i32
    %c0_i32_1 = arith.constant 0 : i32
    return %c0_i32, %c0_i32_0 : i32, i32
  }
  func.func @transform_2(%arg0: i32) -> (i32, i32) {
    %c0_i32 = arith.constant 0 : i32
    %c0_i32_0 = arith.constant 0 : i32
    %c0_i32_1 = arith.constant 0 : i32
    return %c0_i32, %c0_i32_0 : i32, i32
  }
  func.func @transform_3(%arg0: i32) -> (i32, i32) {
    %c0_i32 = arith.constant 0 : i32
    %c0_i32_0 = arith.constant 0 : i32
    %c0_i32_1 = arith.constant 0 : i32
    return %c0_i32, %c0_i32_0 : i32, i32
  }
  func.func @transform_4(%arg0: i32) -> (i32, i32) {
    %c0_i32 = arith.constant 0 : i32
    %c0_i32_0 = arith.constant 0 : i32
    %c0_i32_1 = arith.constant 0 : i32
    return %c0_i32, %c0_i32_0 : i32, i32
  }
  func.func @transform_5(%arg0: i32) -> (i32, i32) {
    %c0_i32 = arith.constant 0 : i32
    %c0_i32_0 = arith.constant 0 : i32
    return %arg0, %c0_i32 : i32, i32
  }
}

</mosaic_0001>

<llo_original>
// kernel: tpu_custom_call.1
$region0: #{tpu_custom_call.1}
  #allocation0 [shape = 'u32[]', space=smem, size = 0x4, offset = 0x4, fixed_abs, tag = 'smem constant byte address 0x4 - core index']
  #allocation1 [shape = 'u32[144,128]{1,0:T(1,128)}', space=vmem, size = 0x12000, scoped, tag = 'internal scratch']
  %s0 = inlined_call_operand.hbm [shape: f32[16,1024], index: 0, kind: input, shape index: {}]
  %s1 = inlined_call_operand.hbm [shape: bf16[128,128], index: 1, kind: input, shape index: {}]
  %s2 = inlined_call_operand.vmem [shape: f32[1,128], index: 2, kind: input, shape index: {}]
  %s3 = inlined_call_operand.hbm [shape: bf16[128,128], index: 3, kind: input, shape index: {}]
  %s4 = inlined_call_operand.vmem [shape: f32[1,128], index: 4, kind: input, shape index: {}]
  %s5 = inlined_call_operand.hbm [shape: f32[16,128], index: 5, kind: output, shape index: {}]
  %s6 = sld [smem:[#allocation0]]
  $region65: #{tpu_custom_call.1} parent=0
    _
  %s8 = ssub.s32 1, %s6
  %s9 = scalar_select 0, %s8, %s6
  $region1: #{tpu_custom_call.1} parent=0
    #allocation2 [shape = 'u8[8192]{0}', space=vmem, size = 0x2000, scoped, tag = 'input window, operand 0']
    #allocation3 [shape = 's32[2]{0}', space=sflag, size = 0x8, scoped, tag = 'scoped memory for tpu_custom_call.1']
    #allocation4 [shape = 's32[2]{0}', space=sflag, size = 0x8, scoped, tag = 'scoped memory for tpu_custom_call.1']
    #allocation5 [shape = 'u8[32768]{0}', space=vmem, size = 0x8000, scoped, tag = 'input window, operand 1, single buffered']
    #allocation6 [shape = 's32[1]{0}', space=sflag, size = 0x4, scoped, tag = 'scoped memory for tpu_custom_call.1']
    #allocation7 [shape = 'u8[32768]{0}', space=vmem, size = 0x8000, scoped, tag = 'input window, operand 3, single buffered']
    #allocation8 [shape = 'u8[8192]{0}', space=vmem, size = 0x2000, scoped, tag = 'output window, operand 0']
    %10 = vsyncpa [#allocation3], 0
    %s11 = scalar_lea.sflag [#allocation3], 1
    %12 = vsyncpa %s11, 0
    %13 = vsyncpa [#allocation6], 0
    %14 = vsyncpa [#allocation4], 0
    %s15 = scalar_lea.sflag [#allocation4], 1
    %16 = vsyncpa %s15, 0
    loop: start=0, step=1, limit=4
    $region2: #{tpu_custom_call.1} parent=1 // loop_pre_header
      _
    $region3: #{tpu_custom_call.1} parent=1 // loop_header
      %s18 = sphi 0, %s22
      %p19 = scmp.ge.s32.totalorder %s18, 4
      %s28 = sphi 0, %s30
      %s31 = sphi 0, %s28
      %s32 = sphi 0, %s31
      %s48 = sphi 0, %s32
      %s52 = sphi 0, %s52
      %s54 = sphi 0, %s52
      %s55 = sphi 0, %s54
      %s69 = sphi 0, %s55
      %s73 = sphi 0, %s73
      %s75 = sphi 0, %s73
      %s76 = sphi 0, %s75
      %s90 = sphi 0, %s76
      %s94 = sphi 0, %s94
      %s96 = sphi 0, %s94
      %s97 = sphi 0, %s96
      %s111 = sphi 0, %s97
      %s115 = sphi 0, %s115
      %s117 = sphi 0, %s115
      %s118 = sphi 0, %s117
      %s132 = sphi 0, %s118
      %s138 = sphi 0, %s140
      %s141 = sphi 0, %s138
      %s142 = sphi 0, %s141
      %s158 = sphi 0, %s142
    $region4: #{tpu_custom_call.1} parent=1 // loop_header_branch
      %21 = sbr.rel (%p19) target = $region8
    $region5: #{tpu_custom_call.1} parent=1 // loop_body
      %s23 = ssub.s32 %s18, 1
      %s24 = ssub.s32 %s18, 2
      %s25 = sadd.s32 %s18, 1
      %s26 = ssub.s32 %s18, %s25
      %p27 = scmp.eq.s32.totalorder %s26, 0
      %s29 = sadd.s32 %s28, 1
      %s30 = scalar_select %p27, %s28, %s29
      %p33 = pneg %p27
      %p34 = scmp.eq.s32.totalorder %s18, 1
      %p35 = por %p33, %p34
      %p36 = scmp.ne.s32.totalorder %s28, %s31
      %p37 = scmp.eq.s32.totalorder %s18, 0
      %p38 = por %p36, %p37
      %p39 = scmp.ne.s32.totalorder %s28, %s31
      %p40 = scmp.eq.s32.totalorder %s23, 1
      %p41 = por %p39, %p40
      %p42 = scmp.ne.s32.totalorder %s31, %s32
      %p43 = scmp.eq.s32.totalorder %s23, 0
      %p44 = por %p42, %p43
      %p45 = scmp.ne.s32.totalorder %s31, %s32
      %p46 = scmp.eq.s32.totalorder %s24, 1
      %p47 = por %p45, %p46
      %p49 = scmp.ne.s32.totalorder %s32, %s48
      %p50 = scmp.eq.s32.totalorder %s24, 0
      %p51 = por %p49, %p50
      %s53 = sadd.s32 %s52, 1
      %p56 = scmp.eq.s32.totalorder %s18, 1
      %p57 = scmp.ne.s32.totalorder %s52, %s54
      %p58 = scmp.eq.s32.totalorder %s18, 0
      %p59 = por %p57, %p58
      %p60 = scmp.ne.s32.totalorder %s52, %s54
      %p61 = scmp.eq.s32.totalorder %s23, 1
      %p62 = por %p60, %p61
      %p63 = scmp.ne.s32.totalorder %s54, %s55
      %p64 = scmp.eq.s32.totalorder %s23, 0
      %p65 = por %p63, %p64
      %p66 = scmp.ne.s32.totalorder %s54, %s55
      %p67 = scmp.eq.s32.totalorder %s24, 1
      %p68 = por %p66, %p67
      %p70 = scmp.ne.s32.totalorder %s55, %s69
      %p71 = scmp.eq.s32.totalorder %s24, 0
      %p72 = por %p70, %p71
      %s74 = sadd.s32 %s73, 1
      %p77 = scmp.eq.s32.totalorder %s18, 1
      %p78 = scmp.ne.s32.totalorder %s73, %s75
      %p79 = scmp.eq.s32.totalorder %s18, 0
      %p80 = por %p78, %p79
      %p81 = scmp.ne.s32.totalorder %s73, %s75
      %p82 = scmp.eq.s32.totalorder %s23, 1
      %p83 = por %p81, %p82
      %p84 = scmp.ne.s32.totalorder %s75, %s76
      %p85 = scmp.eq.s32.totalorder %s23, 0
      %p86 = por %p84, %p85
      %p87 = scmp.ne.s32.totalorder %s75, %s76
      %p88 = scmp.eq.s32.totalorder %s24, 1
      %p89 = por %p87, %p88
      %p91 = scmp.ne.s32.totalorder %s76, %s90
      %p92 = scmp.eq.s32.totalorder %s24, 0
      %p93 = por %p91, %p92
      %s95 = sadd.s32 %s94, 1
      %p98 = scmp.eq.s32.totalorder %s18, 1
      %p99 = scmp.ne.s32.totalorder %s94, %s96
      %p100 = scmp.eq.s32.totalorder %s18, 0
      %p101 = por %p99, %p100
      %p102 = scmp.ne.s32.totalorder %s94, %s96
      %p103 = scmp.eq.s32.totalorder %s23, 1
      %p104 = por %p102, %p103
      %p105 = scmp.ne.s32.totalorder %s96, %s97
      %p106 = scmp.eq.s32.totalorder %s23, 0
      %p107 = por %p105, %p106
      %p108 = scmp.ne.s32.totalorder %s96, %s97
      %p109 = scmp.eq.s32.totalorder %s24, 1
      %p110 = por %p108, %p109
      %p112 = scmp.ne.s32.totalorder %s97, %s111
      %p113 = scmp.eq.s32.totalorder %s24, 0
      %p114 = por %p112, %p113
      %s116 = sadd.s32 %s115, 1
      %p119 = scmp.eq.s32.totalorder %s18, 1
      %p120 = scmp.ne.s32.totalorder %s115, %s117
      %p121 = scmp.eq.s32.totalorder %s18, 0
      %p122 = por %p120, %p121
      %p123 = scmp.ne.s32.totalorder %s115, %s117
      %p124 = scmp.eq.s32.totalorder %s23, 1
      %p125 = por %p123, %p124
      %p126 = scmp.ne.s32.totalorder %s117, %s118
      %p127 = scmp.eq.s32.totalorder %s23, 0
      %p128 = por %p126, %p127
      %p129 = scmp.ne.s32.totalorder %s117, %s118
      %p130 = scmp.eq.s32.totalorder %s24, 1
      %p131 = por %p129, %p130
      %p133 = scmp.ne.s32.totalorder %s118, %s132
      %p134 = scmp.eq.s32.totalorder %s24, 0
      %p135 = por %p133, %p134
      %s136 = ssub.s32 %s18, %s25
      %p137 = scmp.eq.s32.totalorder %s136, 0
      %s139 = sadd.s32 %s138, 1
      %s140 = scalar_select %p137, %s138, %s139
      %p143 = pneg %p137
      %p144 = scmp.eq.s32.totalorder %s18, 1
      %p145 = por %p143, %p144
      %p146 = scmp.ne.s32.totalorder %s138, %s141
      %p147 = scmp.eq.s32.totalorder %s18, 0
      %p148 = por %p146, %p147
      %p149 = scmp.ne.s32.totalorder %s138, %s141
      %p150 = scmp.eq.s32.totalorder %s23, 1
      %p151 = por %p149, %p150
      %p152 = scmp.ne.s32.totalorder %s141, %s142
      %p153 = scmp.eq.s32.totalorder %s23, 0
      %p154 = por %p152, %p153
      %p155 = scmp.ne.s32.totalorder %s141, %s142
      %p156 = scmp.eq.s32.totalorder %s24, 1
      %p157 = por %p155, %p156
      %p159 = scmp.ne.s32.totalorder %s142, %s158
      %p160 = scmp.eq.s32.totalorder %s24, 0
      %p161 = por %p159, %p160
      %p162 = scmp.le.s32.totalorder 1, %s18
      %p163 = scmp.lt.s32.totalorder %s18, 3
      %p164 = pnand %p162, %p163
      %p165 = pneg %p164
      // Predicated region
      $region9: #{tpu_custom_call.1} parent=5 // pred_check
        _
      $region10: #{tpu_custom_call.1} parent=5 // pred_check_branch
        %167 = sbr.rel (%p164) target = $region12
      $region11: #{tpu_custom_call.1} parent=5 // pred_region
        %s168 = ssub.s32 %s18, 1
        // Predicated region
        $region13: #{tpu_custom_call.1} parent=11 // pred_check
          %p169 = pneg %p65
        $region14: #{tpu_custom_call.1} parent=11 // pred_check_branch
          %171 = sbr.rel (%p169) target = $region16
        $region15: #{tpu_custom_call.1} parent=11 // pred_region
          %s173 = ssub.s32 1024, 1024
          %174 = vsyncadd [#allocation6], %s173
          %s175 = sshll.u32 [#allocation5], 4
          %s176 = int_to_ptr.vmem [resolvable:$true] %s175
          %181 = dma.hbm_to_vmem [thread:$0]  %s1, 1024, %s176, [#allocation6], 64, 64, 4
        $region16: #{tpu_custom_call.1} parent=11 // pred_fallthru
          _
        // Predicated region
        $region17: #{tpu_custom_call.1} parent=11 // pred_check
          %p182 = pneg %p86
        $region18: #{tpu_custom_call.1} parent=11 // pred_check_branch
          %184 = sbr.rel (%p182) target = $region20
        $region19: #{tpu_custom_call.1} parent=11 // pred_region
          _
        $region20: #{tpu_custom_call.1} parent=11 // pred_fallthru
          _
        // Predicated region
        $region21: #{tpu_custom_call.1} parent=11 // pred_check
          %p185 = pneg %p107
        $region22: #{tpu_custom_call.1} parent=11 // pred_check_branch
          %187 = sbr.rel (%p185) target = $region24
        $region23: #{tpu_custom_call.1} parent=11 // pred_region
          %s189 = ssub.s32 1024, 1024
          %190 = vsyncadd [#allocation6], %s189
          %s191 = sshll.u32 [#allocation7], 4
          %s192 = int_to_ptr.vmem [resolvable:$true] %s191
          %197 = dma.hbm_to_vmem [thread:$0]  %s3, 1024, %s192, [#allocation6], 64, 64, 4
        $region24: #{tpu_custom_call.1} parent=11 // pred_fallthru
          _
        // Predicated region
        $region25: #{tpu_custom_call.1} parent=11 // pred_check
          %p198 = pneg %p128
        $region26: #{tpu_custom_call.1} parent=11 // pred_check_branch
          %200 = sbr.rel (%p198) target = $region28
        $region27: #{tpu_custom_call.1} parent=11 // pred_region
          _
        $region28: #{tpu_custom_call.1} parent=11 // pred_fallthru
          _
      $region12: #{tpu_custom_call.1} parent=5 // pred_fallthru
        _
      %p201 = scmp.lt.s32.totalorder %s18, 2
      // Predicated region
      $region29: #{tpu_custom_call.1} parent=5 // pred_check
        %p202 = pneg %p201
      $region30: #{tpu_custom_call.1} parent=5 // pred_check_branch
        %204 = sbr.rel (%p202) target = $region32
      $region31: #{tpu_custom_call.1} parent=5 // pred_region
        // Predicated region
        $region33: #{tpu_custom_call.1} parent=31 // pred_check
          %p205 = pneg %p38
        $region34: #{tpu_custom_call.1} parent=31 // pred_check_branch
          %207 = sbr.rel (%p205) target = $region36
        $region35: #{tpu_custom_call.1} parent=31 // pred_region
          %s208 = sand.u32 %s28, 1
          %s209 = scalar_lea.sflag [#allocation3], %s208
          %s210 = sand.u32 %s28, 1
          %s211 = smul.addr %s210, 8
          %s212 = scalar_lea.vmem [#allocation2], %s211
          %s214 = ssub.s32 128, 128
          %215 = vsyncadd %s209, %s214
          %s216 = smul.addr %s18, 8
          %s217 = smul.addr %s216, 128
          %s218 = scalar_lea.hbm %s0, %s217
          %s220 = sshll.u32 %s212, 4
          %s221 = int_to_ptr.vmem [resolvable:$true] %s220
          %223 = dma.hbm_to_vmem [thread:$0]  %s218, 128, %s221, %s209
        $region36: #{tpu_custom_call.1} parent=31 // pred_fallthru
          _
      $region32: #{tpu_custom_call.1} parent=5 // pred_fallthru
        _
      %p224 = scmp.le.s32.totalorder 1, %s18
      %p225 = scmp.lt.s32.totalorder %s18, 3
      %p226 = pnand %p224, %p225
      %p227 = pneg %p226
      // Predicated region
      $region37: #{tpu_custom_call.1} parent=5 // pred_check
        _
      $region38: #{tpu_custom_call.1} parent=5 // pred_check_branch
        %229 = sbr.rel (%p226) target = $region40
      $region39: #{tpu_custom_call.1} parent=5 // pred_region
        %s230 = ssub.s32 %s18, 1
        %s231 = sand.u32 %s31, 1
        %s232 = scalar_lea.sflag [#allocation3], %s231
        %s233 = sand.u32 %s31, 1
        %s234 = smul.addr %s233, 8
        %s235 = scalar_lea.vmem [#allocation2], %s234
        // Predicated region
        $region41: #{tpu_custom_call.1} parent=39 // pred_check
          %p236 = pneg %p44
        $region42: #{tpu_custom_call.1} parent=39 // pred_check_branch
          %238 = sbr.rel (%p236) target = $region44
        $region43: #{tpu_custom_call.1} parent=39 // pred_region
          %239 = dma.done %s232, 128
        $region44: #{tpu_custom_call.1} parent=39 // pred_fallthru
          _
        // Predicated region
        $region45: #{tpu_custom_call.1} parent=39 // pred_check
          %p240 = pneg %p65
        $region46: #{tpu_custom_call.1} parent=39 // pred_check_branch
          %242 = sbr.rel (%p240) target = $region48
        $region47: #{tpu_custom_call.1} parent=39 // pred_region
          %243 = dma.done [#allocation6], 1024
        $region48: #{tpu_custom_call.1} parent=39 // pred_fallthru
          _
        // Predicated region
        $region49: #{tpu_custom_call.1} parent=39 // pred_check
          %p244 = pneg %p107
        $region50: #{tpu_custom_call.1} parent=39 // pred_check_branch
          %246 = sbr.rel (%p244) target = $region52
        $region51: #{tpu_custom_call.1} parent=39 // pred_region
          %247 = dma.done [#allocation6], 1024
        $region52: #{tpu_custom_call.1} parent=39 // pred_fallthru
          _
        %s248 = sand.u32 %s31, 1
        %s249 = scalar_lea.sflag [#allocation3], %s248
        %s250 = sand.u32 %s31, 1
        %s251 = smul.addr %s250, 8
        %s252 = scalar_lea.vmem [#allocation2], %s251
        %p253 = pneg %p44
        %p254 = pneg %p41
        %p255 = pneg %p65
        %p256 = pneg %p62
        %p257 = pneg %p86
        %p258 = pneg %p83
        %p259 = pneg %p107
        %p260 = pneg %p104
        %p261 = pneg %p128
        %p262 = pneg %p125
        %p263 = pneg %p154
        %p264 = pneg %p151
        %s265 = sand.u32 %s141, 1
        %s266 = scalar_lea.sflag [#allocation4], %s265
        %s267 = sand.u32 %s141, 1
        %s268 = smul.addr %s267, 8
        %s269 = scalar_lea.vmem [#allocation8], %s268
        %v271 = vld [vmem:[%s235] sm:$0xff]
        %v272 = vpack.c.bf16 %v271, %v271
        %v273 = vld [vmem:[#allocation5] sm:$0xf]
        %v274 = vld [vmem:[#allocation5 + $0x4] sm:$0xf]
        %v275 = vld [vmem:[#allocation5 + $0x8] sm:$0xf]
        %v276 = vld [vmem:[#allocation5 + $0xc] sm:$0xf]
        %v277 = vld [vmem:[#allocation5 + $0x10] sm:$0xf]
        %v278 = vld [vmem:[#allocation5 + $0x14] sm:$0xf]
        %v279 = vld [vmem:[#allocation5 + $0x18] sm:$0xf]
        %v280 = vld [vmem:[#allocation5 + $0x1c] sm:$0xf]
        %v281 = vld [vmem:[#allocation5 + $0x20] sm:$0xf]
        %v282 = vld [vmem:[#allocation5 + $0x24] sm:$0xf]
        %v283 = vld [vmem:[#allocation5 + $0x28] sm:$0xf]
        %v284 = vld [vmem:[#allocation5 + $0x2c] sm:$0xf]
        %v285 = vld [vmem:[#allocation5 + $0x30] sm:$0xf]
        %v286 = vld [vmem:[#allocation5 + $0x34] sm:$0xf]
        %v287 = vld [vmem:[#allocation5 + $0x38] sm:$0xf]
        %v288 = vld [vmem:[#allocation5 + $0x3c] sm:$0xf]
        %v289 = vld [vmem:[%s2] sm:$0x1]
        %v291 = vlaneseq
        %v292 = vshrl.u32 %v291, 7
        %v293 = vsub.s32 0, %v292
        %v294 = vrot.slane %v289, %v293
        %v312 = vunpack.c.l.b16 %v273
        %v313 = vunpack.c.l.b16 %v274
        %v314 = vunpack.c.l.b16 %v275
        %v315 = vunpack.c.l.b16 %v276
        %v316 = vunpack.c.l.b16 %v277
        %v317 = vunpack.c.l.b16 %v278
        %v318 = vunpack.c.l.b16 %v279
        %v319 = vunpack.c.l.b16 %v280
        %v320 = vunpack.c.l.b16 %v281
        %v321 = vunpack.c.l.b16 %v282
        %v322 = vunpack.c.l.b16 %v283
        %v323 = vunpack.c.l.b16 %v284
        %v324 = vunpack.c.l.b16 %v285
        %v325 = vunpack.c.l.b16 %v286
        %v326 = vunpack.c.l.b16 %v287
        %v327 = vunpack.c.l.b16 %v288
        %v328 = vpack.c.b16 %v313, %v312
        %v329 = vpack.c.b16 %v315, %v314
        %v330 = vpack.c.b16 %v317, %v316
        %v331 = vpack.c.b16 %v319, %v318
        %v332 = vpack.c.b16 %v321, %v320
        %v333 = vpack.c.b16 %v323, %v322
        %v334 = vpack.c.b16 %v325, %v324
        %v335 = vpack.c.b16 %v327, %v326
        %344 = vmatprep.subr.bf16.mxu0 0
        %345 = vmatpush1.bf16.msra.mxu0 %v328
        %346 = vmatprep.subr.bf16.mxu0 0
        %347 = vmatpush1.bf16.msra.mxu0 %v329
        %348 = vmatprep.subr.bf16.mxu0 0
        %349 = vmatpush1.bf16.msra.mxu0 %v330
        %350 = vmatprep.subr.bf16.mxu0 0
        %351 = vmatpush1.bf16.msra.mxu0 %v331
        %352 = vmatprep.subr.bf16.mxu0 0
        %353 = vmatpush1.bf16.msra.mxu0 %v332
        %354 = vmatprep.subr.bf16.mxu0 0
        %355 = vmatpush1.bf16.msra.mxu0 %v333
        %356 = vmatprep.subr.bf16.mxu0 0
        %357 = vmatpush1.bf16.msra.mxu0 %v334
        %358 = vmatprep.subr.bf16.mxu0 0
        %359 = vmatpush1.bf16.msra.mxu0 %v335
        %360 = vmatprep.subr.bf16.mxu0 0
        %361 = vmatpush1.bf16.msra.mxu0 0
        %362 = vmatprep.subr.bf16.mxu0 0
        %363 = vmatpush1.bf16.msra.mxu0 0
        %364 = vmatprep.subr.bf16.mxu0 0
        %365 = vmatpush1.bf16.msra.mxu0 0
        %366 = vmatprep.subr.bf16.mxu0 0
        %367 = vmatpush1.bf16.msra.mxu0 0
        %368 = vmatprep.subr.bf16.mxu0 0
        %369 = vmatpush1.bf16.msra.mxu0 0
        %370 = vmatprep.subr.bf16.mxu0 0
        %371 = vmatpush1.bf16.msra.mxu0 0
        %372 = vmatprep.subr.bf16.mxu0 0
        %373 = vmatpush1.bf16.msra.mxu0 0
        %374 = vmatprep.subr.bf16.mxu0 0
        %375 = vmatpush1.bf16.msra.mxu0 0
        %376 = vmatprep.mubr.bf16.mxu0 0
        %377 = vmatmul.mubr.bf16.gmra.mrb[0].mxu0 %v272
        %v378 = vpop.f32.mrb[0].mxu0
        %v379 = vadd.f32 %v294, %v378
        %v380 = vpop.f32.mrb[0].mxu0
        %v381 = vpop.f32.mrb[0].mxu0
        %v382 = vpop.f32.mrb[0].mxu0
        %383 = vdwg.mxu0
        %v384 = vtanh.pop %v379
        %v385 = vpack.c.bf16 %v384, %v384
        %v386 = vld [vmem:[#allocation7] sm:$0xf]
        %v387 = vld [vmem:[#allocation7 + $0x4] sm:$0xf]
        %v388 = vld [vmem:[#allocation7 + $0x8] sm:$0xf]
        %v389 = vld [vmem:[#allocation7 + $0xc] sm:$0xf]
        %v390 = vld [vmem:[#allocation7 + $0x10] sm:$0xf]
        %v391 = vld [vmem:[#allocation7 + $0x14] sm:$0xf]
        %v392 = vld [vmem:[#allocation7 + $0x18] sm:$0xf]
        %v393 = vld [vmem:[#allocation7 + $0x1c] sm:$0xf]
        %v394 = vld [vmem:[#allocation7 + $0x20] sm:$0xf]
        %v395 = vld [vmem:[#allocation7 + $0x24] sm:$0xf]
        %v396 = vld [vmem:[#allocation7 + $0x28] sm:$0xf]
        %v397 = vld [vmem:[#allocation7 + $0x2c] sm:$0xf]
        %v398 = vld [vmem:[#allocation7 + $0x30] sm:$0xf]
        %v399 = vld [vmem:[#allocation7 + $0x34] sm:$0xf]
        %v400 = vld [vmem:[#allocation7 + $0x38] sm:$0xf]
        %v401 = vld [vmem:[#allocation7 + $0x3c] sm:$0xf]
        %v402 = vld [vmem:[%s4] sm:$0x1]
        %v404 = vlaneseq
        %v405 = vshrl.u32 %v404, 7
        %v406 = vsub.s32 0, %v405
        %v407 = vrot.slane %v402, %v406
        %v425 = vunpack.c.l.b16 %v386
        %v426 = vunpack.c.l.b16 %v387
        %v427 = vunpack.c.l.b16 %v388
        %v428 = vunpack.c.l.b16 %v389
        %v429 = vunpack.c.l.b16 %v390
        %v430 = vunpack.c.l.b16 %v391
        %v431 = vunpack.c.l.b16 %v392
        %v432 = vunpack.c.l.b16 %v393
        %v433 = vunpack.c.l.b16 %v394
        %v434 = vunpack.c.l.b16 %v395
        %v435 = vunpack.c.l.b16 %v396
        %v436 = vunpack.c.l.b16 %v397
        %v437 = vunpack.c.l.b16 %v398
        %v438 = vunpack.c.l.b16 %v399
        %v439 = vunpack.c.l.b16 %v400
        %v440 = vunpack.c.l.b16 %v401
        %v441 = vpack.c.b16 %v426, %v425
        %v442 = vpack.c.b16 %v428, %v427
        %v443 = vpack.c.b16 %v430, %v429
        %v444 = vpack.c.b16 %v432, %v431
        %v445 = vpack.c.b16 %v434, %v433
        %v446 = vpack.c.b16 %v436, %v435
        %v447 = vpack.c.b16 %v438, %v437
        %v448 = vpack.c.b16 %v440, %v439
        %457 = vmatprep.subr.bf16.mxu0 0
        %458 = vmatpush1.bf16.msra.mxu0 %v441
        %459 = vmatprep.subr.bf16.mxu0 0
        %460 = vmatpush1.bf16.msra.mxu0 %v442
        %461 = vmatprep.subr.bf16.mxu0 0
        %462 = vmatpush1.bf16.msra.mxu0 %v443
        %463 = vmatprep.subr.bf16.mxu0 0
        %464 = vmatpush1.bf16.msra.mxu0 %v444
        %465 = vmatprep.subr.bf16.mxu0 0
        %466 = vmatpush1.bf16.msra.mxu0 %v445
        %467 = vmatprep.subr.bf16.mxu0 0
        %468 = vmatpush1.bf16.msra.mxu0 %v446
        %469 = vmatprep.subr.bf16.mxu0 0
        %470 = vmatpush1.bf16.msra.mxu0 %v447
        %471 = vmatprep.subr.bf16.mxu0 0
        %472 = vmatpush1.bf16.msra.mxu0 %v448
        %473 = vmatprep.subr.bf16.mxu0 0
        %474 = vmatpush1.bf16.msra.mxu0 0
        %475 = vmatprep.subr.bf16.mxu0 0
        %476 = vmatpush1.bf16.msra.mxu0 0
        %477 = vmatprep.subr.bf16.mxu0 0
        %478 = vmatpush1.bf16.msra.mxu0 0
        %479 = vmatprep.subr.bf16.mxu0 0
        %480 = vmatpush1.bf16.msra.mxu0 0
        %481 = vmatprep.subr.bf16.mxu0 0
        %482 = vmatpush1.bf16.msra.mxu0 0
        %483 = vmatprep.subr.bf16.mxu0 0
        %484 = vmatpush1.bf16.msra.mxu0 0
        %485 = vmatprep.subr.bf16.mxu0 0
        %486 = vmatpush1.bf16.msra.mxu0 0
        %487 = vmatprep.subr.bf16.mxu0 0
        %488 = vmatpush1.bf16.msra.mxu0 0
        %489 = vmatprep.mubr.bf16.mxu0 0
        %490 = vmatmul.mubr.bf16.gmra.mrb[0].mxu0 %v385
        %v491 = vpop.f32.mrb[0].mxu0
        %v492 = vadd.f32 %v407, %v491
        %v493 = vpop.f32.mrb[0].mxu0
        %v494 = vpop.f32.mrb[0].mxu0
        %v495 = vpop.f32.mrb[0].mxu0
        %496 = vdwg.mxu0
        %497 = vst [vmem:[%s269] sm:$0xff] %v492
        %s498 = sand.u32 %s141, 1
        %s499 = scalar_lea.sflag [#allocation4], %s498
        %s500 = sand.u32 %s141, 1
        %s501 = smul.addr %s500, 8
        %s502 = scalar_lea.vmem [#allocation8], %s501
        // Predicated region
        $region53: #{tpu_custom_call.1} parent=39 // pred_check
          %p503 = pneg %p151
        $region54: #{tpu_custom_call.1} parent=39 // pred_check_branch
          %505 = sbr.rel (%p503) target = $region56
        $region55: #{tpu_custom_call.1} parent=39 // pred_region
          %s507 = ssub.s32 128, 128
          %508 = vsyncadd %s499, %s507
          %s509 = smul.addr %s23, 128
          %s510 = scalar_lea.hbm %s5, %s509
          %s512 = sshll.u32 %s502, 4
          %s513 = int_to_ptr.vmem [resolvable:$true] %s512
          %515 = dma.vmem_to_hbm [thread:$0]  %s513, 128, %s510, %s499
        $region56: #{tpu_custom_call.1} parent=39 // pred_fallthru
          _
      $region40: #{tpu_custom_call.1} parent=5 // pred_fallthru
        _
      %p516 = scmp.le.s32.totalorder 2, %s18
      // Predicated region
      $region57: #{tpu_custom_call.1} parent=5 // pred_check
        %p517 = pneg %p516
      $region58: #{tpu_custom_call.1} parent=5 // pred_check_branch
        %519 = sbr.rel (%p517) target = $region60
      $region59: #{tpu_custom_call.1} parent=5 // pred_region
        %s520 = ssub.s32 %s18, 2
        // Predicated region
        $region61: #{tpu_custom_call.1} parent=59 // pred_check
          %p521 = pneg %p157
        $region62: #{tpu_custom_call.1} parent=59 // pred_check_branch
          %523 = sbr.rel (%p521) target = $region64
        $region63: #{tpu_custom_call.1} parent=59 // pred_region
          %s524 = sand.u32 %s142, 1
          %s525 = scalar_lea.sflag [#allocation4], %s524
          %s526 = sand.u32 %s142, 1
          %s527 = smul.addr %s526, 8
          %s528 = scalar_lea.vmem [#allocation8], %s527
          %529 = dma.done %s525, 128
        $region64: #{tpu_custom_call.1} parent=59 // pred_fallthru
          _
      $region60: #{tpu_custom_call.1} parent=5 // pred_fallthru
        _
    $region6: #{tpu_custom_call.1} parent=1 // loop_footer
      %s22 = sadd.s32 1, %s18
    $region7: #{tpu_custom_call.1} parent=1 // loop_footer_branch
      %17 = sbr.rel target = $region3
    $region8: #{tpu_custom_call.1} parent=1 // loop_exit
      _
    %530 = vsyncpa [#allocation3], 1
    %s531 = scalar_lea.sflag [#allocation3], 1
    %532 = vsyncpa %s531, 1
    %533 = vsyncpa [#allocation6], 1
    %534 = vsyncpa [#allocation4], 1
    %s535 = scalar_lea.sflag [#allocation4], 1
    %536 = vsyncpa %s535, 1

</llo_original>
